<compile_context>
chip_gen: v5e
topology: v5e:2x2
jax: 0.10.0
libtpu: 0.0.40
codegen_flags: <defaults>
</compile_context>

<pallas_src>
import math
import jax
import jax.numpy as jnp
from jax.experimental import pallas as pl
from jax.experimental.pallas import tpu as pltpu


def _round_up(x, m):
    return ((x + m - 1) // m) * m


def _class_tiling(n_classes, class_tile=512):
    """Lane-dense class tile + padded class extent (multiples of 128)."""
    assert class_tile % 128 == 0
    c128 = _round_up(max(n_classes, 1), 128)
    if c128 > class_tile:
        return class_tile, _round_up(c128, class_tile)
    return c128, c128


# -----------------------------------------------------------------------------
# Pallas kernel: one MXU matmul per (class tile, batch tile) grid point.
#   scores_tile[f32] = e1_tile[bf16] @ w_eff_tile[bf16]   (f32 accumulation)
# -----------------------------------------------------------------------------
def lbm_kernel(e1_ref, w_ref, out_ref):
    out_ref[...] = jnp.dot(e1_ref[...], w_ref[...],
                           preferred_element_type=jnp.float32)


def lbm_scores(e1_bf16, w_eff_bf16, n_classes, *,
               class_tile=512, batch_tile=256, max_resident_rows=1024):
    """scores = e1 @ W_eff, class axis outer (single HBM pass over W_eff).

    e1_bf16:    [B, doc_dim]       bf16
    w_eff_bf16: [doc_dim, C_pad]   bf16, C_pad a multiple of 128 (and of tile)
    returns:    [B, n_classes]     f32
    """
    B, D = e1_bf16.shape
    Dw, Cp = w_eff_bf16.shape
    assert Dw == D and Cp % 128 == 0

    # Class tile (lane-dense, multiple of 128).
    tc = class_tile if Cp > class_tile else Cp
    assert Cp % tc == 0
    grid_c = Cp // tc

    # Batch tile: keep the whole (padded) batch resident when it fits so the
    # batch grid axis collapses to 1 and both e1 and W_eff are streamed from
    # HBM exactly once.  Otherwise tile the batch on the INNER grid axis; the
    # W block index only depends on the outer (class) axis, so W_eff is still
    # fetched exactly once in total.  16-row multiples for bf16 packing.
    b16 = _round_up(B, 16)
    if b16 <= max_resident_rows:
        tb = b16
    else:
        tb = _round_up(min(batch_tile, b16), 16)
    Bp = _round_up(B, tb)
    grid_b = Bp // tb

    if Bp != B:
        e1_bf16 = jnp.pad(e1_bf16, ((0, Bp - B), (0, 0)))

    # Deeper W buffering only pays when the class grid is long and there is no
    # inner batch loop already hiding the W DMA.
    w_buffers = 3 if (grid_c >= 3 and grid_b == 1) else 2

    # Explicit VMEM budget: double-buffered e1/out + w_buffers-deep W + slack,
    # capped at 64 MiB so the same config is safe on v7x.
    vmem_need = 2 * tb * D * 2 + w_buffers * D * tc * 2 + 2 * tb * tc * 4
    vmem_limit = int(min(max(vmem_need * 3 // 2, 32 * 1024 * 1024),
                         64 * 1024 * 1024))

    cost = pl.CostEstimate(
        flops=2 * Bp * D * Cp,
        transcendentals=0,
        bytes_accessed=Bp * D * 2 + D * Cp * 2 + Bp * Cp * 4)

    w_index_map = lambda j, i: (0, j)          # depends only on outer axis
    try:
        w_spec = pl.BlockSpec((D, tc), w_index_map,
                              pipeline_mode=pl.Buffered(w_buffers))
    except TypeError:  # pipeline_mode unsupported -> default double buffering
        w_spec = pl.BlockSpec((D, tc), w_index_map)

    out = pl.pallas_call(
        lbm_kernel,
        out_shape=jax.ShapeDtypeStruct((Bp, Cp), jnp.float32),
        grid_spec=pl.GridSpec(
            # Class axis OUTER, batch axis INNER -> single HBM pass over W.
            grid=(grid_c, grid_b),
            in_specs=[
                pl.BlockSpec((tb, D), lambda j, i: (i, 0)),
                w_spec,
            ],
            out_specs=pl.BlockSpec((tb, tc), lambda j, i: (i, j)),
        ),
        compiler_params=pltpu.CompilerParams(
            dimension_semantics=("parallel", "parallel"),
            vmem_limit_bytes=vmem_limit),
        cost_estimate=cost,
    )(e1_bf16, w_eff_bf16)

    if Bp == B and Cp == n_classes:
        return out
    return out[:B, :n_classes]


# -----------------------------------------------------------------------------
# Plain-JAX glue
# -----------------------------------------------------------------------------
def stub_doc_encoder(input_ids, attention_mask, embed_table):
    """Deterministic stand-in for AutoModel(...)[1] (pooled output)."""
    emb = embed_table[input_ids]                          # [B, S, D]
    mask = attention_mask[..., None].astype(emb.dtype)    # [B, S, 1]
    summed = jnp.sum(emb * mask, axis=1)                  # [B, D]
    denom = jnp.maximum(jnp.sum(mask, axis=1), 1.0)       # [B, 1]
    return summed / denom                                 # [B, D]


def prepare_params(embed_table, lbm_weight, label_embeddings, *, class_tile=512):
    """One-time static prep: fold W @ E2^T, pad class axis, cast bf16."""
    n_classes = label_embeddings.shape[0]
    w_eff = lbm_weight @ label_embeddings.T               # [doc_dim, n_classes] f32
    tc, c_pad = _class_tiling(n_classes, class_tile)
    if c_pad != n_classes:
        w_eff = jnp.pad(w_eff, ((0, 0), (0, c_pad - n_classes)))
    # TODO(synk): generation-specific W quantization (int8 on v5e/v6e, fp8-e4m3
    #             on v7x with per-class scales in a kernel epilogue) would halve
    #             the dominant W_eff HBM stream; omitted pending accuracy checks.
    return {
        "embed_table": embed_table,
        "w_eff": w_eff.astype(jnp.bfloat16),
        "n_classes": n_classes,
        "class_tile": tc,
    }


def class_model_forward(input_ids, attention_mask, params):
    # TODO(synk): pretrained transformer doc_encoder not translatable; using a
    #             deterministic pooled-embedding stand-in for the pooled output.
    doc_tensor = stub_doc_encoder(input_ids, attention_mask,
                                  params["embed_table"])
    e1 = doc_tensor.astype(jnp.bfloat16)   # bf16 MXU inputs, f32 accumulate
    return lbm_scores(e1, params["w_eff"], params["n_classes"],
                      class_tile=params["class_tile"])


if __name__ == "__main__":
    # ---------------- Test 1: small module-consistent shapes ----------------
    B = 8            # batch
    S = 16           # sequence length (for the encoder stub)
    VOCAB = 32
    DOC_DIM = 128    # enc_dim
    LABEL_DIM = 128  # class embedding dim
    N_CLASSES = 16

    key = jax.random.PRNGKey(0)
    k_ids, k_emb, k_lbl, k_w = jax.random.split(key, 4)

    input_ids = jax.random.randint(k_ids, (B, S), 0, VOCAB, dtype=jnp.int32)
    attention_mask = jnp.ones((B, S), dtype=jnp.int32)

    embed_table = jax.random.normal(k_emb, (VOCAB, DOC_DIM),
                                    dtype=jnp.float32) * 0.02
    label_embeddings = jax.random.normal(k_lbl, (N_CLASSES, LABEL_DIM),
                                         dtype=jnp.float32)

    # LBM weight: uniform(-1/sqrt(l_dim), 1/sqrt(l_dim)), bias=False.
    bound = 1.0 / math.sqrt(DOC_DIM)
    lbm_weight = jax.random.uniform(k_w, (DOC_DIM, LABEL_DIM),
                                    minval=-bound, maxval=bound,
                                    dtype=jnp.float32)

    params = prepare_params(embed_table, lbm_weight, label_embeddings)

    scores = class_model_forward(input_ids, attention_mask, params)
    scores = jax.block_until_ready(scores)
    assert scores.shape == (B, N_CLASSES)

    # Reference A: same bf16-input / f32-accumulate math via plain XLA dot.
    doc_ref = stub_doc_encoder(input_ids, attention_mask, embed_table)
    w_eff_ref = lbm_weight @ label_embeddings.T
    ref_bf16 = jnp.dot(doc_ref.astype(jnp.bfloat16),
                       w_eff_ref.astype(jnp.bfloat16),
                       preferred_element_type=jnp.float32)
    assert jnp.allclose(scores, ref_bf16, atol=1e-3, rtol=1e-3)

    # Reference B: original f32 two-matmul order (looser tol: bf16 MXU inputs
    # + f32 re-association from the W @ E2^T fold).
    ref_f32 = (doc_ref @ lbm_weight) @ label_embeddings.T
    assert jnp.allclose(scores, ref_f32, atol=5e-3, rtol=5e-2)

    # -------- Test 2: multi class-tile path (class-outer, Buffered(3)) -------
    N_CLASSES2 = 1200   # pads to 1536 -> 3 class tiles of 512
    B2 = 48
    k_lbl2, k_w2, k_e2 = jax.random.split(jax.random.PRNGKey(1), 3)
    label_emb2 = jax.random.normal(k_lbl2, (N_CLASSES2, LABEL_DIM),
                                   dtype=jnp.float32)
    lbm_w2 = jax.random.uniform(k_w2, (DOC_DIM, LABEL_DIM),
                                minval=-bound, maxval=bound, dtype=jnp.float32)
    params2 = prepare_params(embed_table, lbm_w2, label_emb2)
    e1_2 = (jax.random.normal(k_e2, (B2, DOC_DIM), dtype=jnp.float32)
            * 0.1).astype(jnp.bfloat16)
    s2 = lbm_scores(e1_2, params2["w_eff"], N_CLASSES2,
                    class_tile=params2["class_tile"])
    s2 = jax.block_until_ready(s2)
    assert s2.shape == (B2, N_CLASSES2)
    ref2 = jnp.dot(e1_2, params2["w_eff"],
                   preferred_element_type=jnp.float32)[:, :N_CLASSES2]
    assert jnp.allclose(s2, ref2, atol=2e-3, rtol=2e-3)

    # ------ Test 3: tiled-batch path (forced tiny resident-batch budget) -----
    B3 = 80
    e1_3 = (jax.random.normal(jax.random.PRNGKey(2), (B3, DOC_DIM),
                              dtype=jnp.float32) * 0.1).astype(jnp.bfloat16)
    s3 = lbm_scores(e1_3, params2["w_eff"], N_CLASSES2,
                    class_tile=params2["class_tile"],
                    batch_tile=32, max_resident_rows=16)
    s3 = jax.block_until_ready(s3)
    assert s3.shape == (B3, N_CLASSES2)
    ref3 = jnp.dot(e1_3, params2["w_eff"],
                   preferred_element_type=jnp.float32)[:, :N_CLASSES2]
    assert jnp.allclose(s3, ref3, atol=2e-3, rtol=2e-3)

    print("KERNEL_OK")
</pallas_src>

<mosaic_0001>
module attributes {stable_mosaic.version = 11 : i64} {
  func.func @lbm_kernel(%arg0: i32, %arg1: i32, %arg2: memref<16x128xbf16, #tpu.memory_space<vmem>>, %arg3: memref<128x128xbf16, #tpu.memory_space<vmem>>, %arg4: memref<16x128xf32, #tpu.memory_space<vmem>>) attributes {dimension_semantics = [#tpu.dimension_semantics<parallel>, #tpu.dimension_semantics<parallel>], iteration_bounds = array<i64: 1, 1>, scalar_prefetch = 0 : i64, scratch_operands = 0 : i64, tpu.core_type = #tpu.core_type<tc>, window_params = [{transform_indices = @transform_0, window_bounds = array<i64: 16, 128>}, {pipeline_mode = #tpu.pipeline_mode<double_buffered>, transform_indices = @transform_1, window_bounds = array<i64: 128, 128>}, {transform_indices = @transform_2, window_bounds = array<i64: 16, 128>}]} {
    %c0 = arith.constant 0 : index
    %c0_0 = arith.constant 0 : index
    %0 = vector.load %arg2[%c0, %c0_0] : memref<16x128xbf16, #tpu.memory_space<vmem>>, vector<16x128xbf16>
    %c0_1 = arith.constant 0 : index
    %c0_2 = arith.constant 0 : index
    %1 = vector.load %arg3[%c0_1, %c0_2] : memref<128x128xbf16, #tpu.memory_space<vmem>>, vector<128x128xbf16>
    %cst = arith.constant dense<0.000000e+00> : vector<16x128xf32>
    %2 = tpu.matmul %0, %1, %cst {dimension_numbers = #tpu.dot_dimension_numbers<[1], [0], [0], [1], [0, 0, 1, 1], [], []>} : vector<16x128xbf16>, vector<128x128xbf16>, vector<16x128xf32> -> vector<16x128xf32>
    %c0_3 = arith.constant 0 : index
    %c0_4 = arith.constant 0 : index
    %3 = vector.load %arg4[%c0_3, %c0_4] : memref<16x128xf32, #tpu.memory_space<vmem>>, vector<16x128xf32>
    tpu.vector_store %arg4[%c0_3, %c0_4], %2 {strides = array<i32>} : memref<16x128xf32, #tpu.memory_space<vmem>>, vector<16x128xf32>,
    return
  }
  func.func @transform_0(%arg0: i32, %arg1: i32) -> (i32, i32) {
    %c0_i32 = arith.constant 0 : i32
    %c0_i32_0 = arith.constant 0 : i32
    return %arg1, %c0_i32 : i32, i32
  }
  func.func @transform_1(%arg0: i32, %arg1: i32) -> (i32, i32) {
    %c0_i32 = arith.constant 0 : i32
    %c0_i32_0 = arith.constant 0 : i32
    return %c0_i32, %arg0 : i32, i32
  }
  func.func @transform_2(%arg0: i32, %arg1: i32) -> (i32, i32) {
    %c0_i32 = arith.constant 0 : i32
    return %arg1, %arg0 : i32, i32
  }
}

</mosaic_0001>

<llo_original>
// kernel: tpu_custom_call.1
$region0: #{tpu_custom_call.1}
  #allocation0 [shape = 'u32[]', space=smem, size = 0x4, offset = 0x4, fixed_abs, tag = 'smem constant byte address 0x4 - core index']
  #allocation1 [shape = 'u32[72,128]{1,0:T(1,128)}', space=vmem, size = 0x9000, scoped, tag = 'internal scratch']
  %s0 = inlined_call_operand.hbm [shape: bf16[16,128], index: 0, kind: input, shape index: {}]
  %s1 = inlined_call_operand.hbm [shape: bf16[128,128], index: 1, kind: input, shape index: {}]
  %s2 = inlined_call_operand.hbm [shape: f32[16,128], index: 2, kind: output, shape index: {}]
  %s3 = sld [smem:[#allocation0]]
  $region26: #{tpu_custom_call.1} parent=0
    _
  %s5 = ssub.s32 1, %s3
  %s6 = scalar_select 0, %s5, %s3
  $region1: #{tpu_custom_call.1} parent=0
    #allocation2 [shape = 'u8[4096]{0}', space=vmem, size = 0x1000, scoped, tag = 'input window, operand 0, single buffered']
    #allocation3 [shape = 's32[1]{0}', space=sflag, size = 0x4, scoped, tag = 'scoped memory for tpu_custom_call.1']
    #allocation4 [shape = 's32[1]{0}', space=sflag, size = 0x4, scoped, tag = 'scoped memory for tpu_custom_call.1']
    #allocation5 [shape = 'u8[32768]{0}', space=vmem, size = 0x8000, scoped, tag = 'input window, operand 1, single buffered']
    #allocation6 [shape = 's32[1]{0}', space=sflag, size = 0x4, scoped, tag = 'scoped memory for tpu_custom_call.1']
    #allocation7 [shape = 'u8[8192]{0}', space=vmem, size = 0x2000, scoped, tag = 'output window, operand 0, single buffered']
    %7 = vsyncpa [#allocation3], 0
    %8 = vsyncpa [#allocation6], 0
    %9 = vsyncpa [#allocation4], 0
    // Predicated region
    $region2: #{tpu_custom_call.1} parent=1 // pred_check
      _
    $region3: #{tpu_custom_call.1} parent=1 // pred_check_branch
      %11 = sbr.rel (0) target = $region5
    $region4: #{tpu_custom_call.1} parent=1 // pred_region
      %13 = vsyncadd [#allocation3], 0
      %s14 = sshll.u32 %s0, 4
      %s15 = int_to_ptr.hbm [resolvable:$true] %s14
      %s16 = sshll.u32 [#allocation2], 4
      %s17 = int_to_ptr.vmem [resolvable:$true] %s16
      %22 = dma.hbm_to_vmem [thread:$0]  %s15, 128, %s17, [#allocation3], 64, 64, 4
    $region5: #{tpu_custom_call.1} parent=1 // pred_fallthru
      _
    // Predicated region
    $region6: #{tpu_custom_call.1} parent=1 // pred_check
      _
    $region7: #{tpu_custom_call.1} parent=1 // pred_check_branch
      %24 = sbr.rel (0) target = $region9
    $region8: #{tpu_custom_call.1} parent=1 // pred_region
      %26 = vsyncadd [#allocation6], 0
      %s27 = sshll.u32 %s1, 4
      %s28 = int_to_ptr.hbm [resolvable:$true] %s27
      %s29 = sshll.u32 [#allocation5], 4
      %s30 = int_to_ptr.vmem [resolvable:$true] %s29
      %35 = dma.hbm_to_vmem [thread:$0]  %s28, 1024, %s30, [#allocation6], 64, 64, 4
    $region9: #{tpu_custom_call.1} parent=1 // pred_fallthru
      _
    // Predicated region
    $region10: #{tpu_custom_call.1} parent=1 // pred_check
      _
    $region11: #{tpu_custom_call.1} parent=1 // pred_check_branch
      %37 = sbr.rel (0) target = $region13
    $region12: #{tpu_custom_call.1} parent=1 // pred_region
      %39 = dma.done [#allocation3], 128
    $region13: #{tpu_custom_call.1} parent=1 // pred_fallthru
      _
    // Predicated region
    $region14: #{tpu_custom_call.1} parent=1 // pred_check
      _
    $region15: #{tpu_custom_call.1} parent=1 // pred_check_branch
      %41 = sbr.rel (0) target = $region17
    $region16: #{tpu_custom_call.1} parent=1 // pred_region
      %43 = dma.done [#allocation6], 1024
    $region17: #{tpu_custom_call.1} parent=1 // pred_fallthru
      _
    %v44 = vld [vmem:[#allocation2] sm:$0xf]
    %v45 = vld [vmem:[#allocation2 + $0x4] sm:$0xf]
    %v46 = vld [vmem:[#allocation5] sm:$0xf]
    %v47 = vld [vmem:[#allocation5 + $0x4] sm:$0xf]
    %v48 = vld [vmem:[#allocation5 + $0x8] sm:$0xf]
    %v49 = vld [vmem:[#allocation5 + $0xc] sm:$0xf]
    %v50 = vld [vmem:[#allocation5 + $0x10] sm:$0xf]
    %v51 = vld [vmem:[#allocation5 + $0x14] sm:$0xf]
    %v52 = vld [vmem:[#allocation5 + $0x18] sm:$0xf]
    %v53 = vld [vmem:[#allocation5 + $0x1c] sm:$0xf]
    %v54 = vld [vmem:[#allocation5 + $0x20] sm:$0xf]
    %v55 = vld [vmem:[#allocation5 + $0x24] sm:$0xf]
    %v56 = vld [vmem:[#allocation5 + $0x28] sm:$0xf]
    %v57 = vld [vmem:[#allocation5 + $0x2c] sm:$0xf]
    %v58 = vld [vmem:[#allocation5 + $0x30] sm:$0xf]
    %v59 = vld [vmem:[#allocation5 + $0x34] sm:$0xf]
    %v60 = vld [vmem:[#allocation5 + $0x38] sm:$0xf]
    %v61 = vld [vmem:[#allocation5 + $0x3c] sm:$0xf]
    %v64 = vunpack.c.l.b16 %v44
    %v65 = vunpack.c.l.b16 %v45
    %v66 = vpack.c.b16 %v65, %v64
    %v84 = vunpack.c.l.b16 %v46
    %v85 = vunpack.c.l.b16 %v47
    %v86 = vunpack.c.l.b16 %v48
    %v87 = vunpack.c.l.b16 %v49
    %v88 = vunpack.c.l.b16 %v50
    %v89 = vunpack.c.l.b16 %v51
    %v90 = vunpack.c.l.b16 %v52
    %v91 = vunpack.c.l.b16 %v53
    %v92 = vunpack.c.l.b16 %v54
    %v93 = vunpack.c.l.b16 %v55
    %v94 = vunpack.c.l.b16 %v56
    %v95 = vunpack.c.l.b16 %v57
    %v96 = vunpack.c.l.b16 %v58
    %v97 = vunpack.c.l.b16 %v59
    %v98 = vunpack.c.l.b16 %v60
    %v99 = vunpack.c.l.b16 %v61
    %v100 = vpack.c.b16 %v85, %v84
    %v101 = vpack.c.b16 %v87, %v86
    %v102 = vpack.c.b16 %v89, %v88
    %v103 = vpack.c.b16 %v91, %v90
    %v104 = vpack.c.b16 %v93, %v92
    %v105 = vpack.c.b16 %v95, %v94
    %v106 = vpack.c.b16 %v97, %v96
    %v107 = vpack.c.b16 %v99, %v98
    %116 = vmatpush.bf16.msra.mxu0 %v107
    %117 = vmatpush.bf16.msra.mxu0 %v106
    %118 = vmatpush.bf16.msra.mxu0 %v105
    %119 = vmatpush.bf16.msra.mxu0 %v104
    %120 = vmatpush.bf16.msra.mxu0 %v103
    %121 = vmatpush.bf16.msra.mxu0 %v102
    %122 = vmatpush.bf16.msra.mxu0 %v101
    %123 = vmatpush.bf16.msra.mxu0 %v100
    %124 = vmatmul.bf16.gmra.mxu0 %v66
    %v125 = vpop.f32.mrf.mxu0
    %v126 = vadd.f32 0.0, %v125
    %v127 = vpop.f32.mrf.mxu0
    %v128 = vadd.f32 0.0, %v127
    %129 = vdwg.mxu0
    %130 = vst [vmem:[#allocation7] sm:$0xff] %v126
    %131 = vst [vmem:[#allocation7 + $0x8] sm:$0xff] %v128
    // Predicated region
    $region18: #{tpu_custom_call.1} parent=1 // pred_check
      _
    $region19: #{tpu_custom_call.1} parent=1 // pred_check_branch
      %133 = sbr.rel (0) target = $region21
    $region20: #{tpu_custom_call.1} parent=1 // pred_region
      %135 = vsyncadd [#allocation4], 0
      %s136 = sshll.u32 [#allocation7], 4
      %s137 = int_to_ptr.vmem [resolvable:$true] %s136
      %s138 = sshll.u32 %s2, 4
      %s139 = int_to_ptr.hbm [resolvable:$true] %s138
      %144 = dma.vmem_to_hbm [thread:$0]  %s137, 256, %s139, [#allocation4], 128, 128, 8
    $region21: #{tpu_custom_call.1} parent=1 // pred_fallthru
      _
    // Predicated region
    $region22: #{tpu_custom_call.1} parent=1 // pred_check
      _
    $region23: #{tpu_custom_call.1} parent=1 // pred_check_branch
      %146 = sbr.rel (0) target = $region25
    $region24: #{tpu_custom_call.1} parent=1 // pred_region
      %148 = dma.done [#allocation4], 256
    $region25: #{tpu_custom_call.1} parent=1 // pred_fallthru
      _
    %149 = vsyncpa [#allocation3], 1
    %150 = vsyncpa [#allocation6], 1
    %151 = vsyncpa [#allocation4], 1

</llo_original>
